<compile_context>
chip_gen: v5e
topology: v5e:2x2
jax: 0.10.0
libtpu: 0.0.40
codegen_flags: <defaults>
</compile_context>

<pallas_src>
import functools

import jax
import jax.numpy as jnp
from jax.experimental import pallas as pl
from jax.experimental.pallas import tpu as pltpu


def _wtml_kernel(a_ref, p_ref, n_ref, w_ref, out_ref, *,
                 margin, eps, batch_size, block_rows):
    i = pl.program_id(0)

    a = a_ref[...].astype(jnp.float32)
    pos = p_ref[...].astype(jnp.float32)
    neg = n_ref[...].astype(jnp.float32)

    # PyTorch nn.PairwiseDistance adds eps to the *difference* before the norm.
    d_ap = jnp.sqrt(jnp.sum((a - pos + eps) ** 2, axis=-1, keepdims=True))  # (TB, 1)
    d_an = jnp.sqrt(jnp.sum((a - neg + eps) ** 2, axis=-1, keepdims=True))  # (TB, 1)

    w = w_ref[...]                                                          # (TB, 1) f32
    loss = jnp.maximum(d_ap - d_an + jnp.float32(margin), 0.0) * w          # (TB, 1)

    # Mask padded rows of a ragged last tile before the partial reduction
    # (jnp.where select, so garbage/NaN in padding cannot leak through).
    row_ids = jax.lax.broadcasted_iota(jnp.int32, loss.shape, 0) + i * block_rows
    loss = jnp.where(row_ids < batch_size, loss, jnp.float32(0.0))

    # Per-block partial sum; final reduction (and mean division) in the wrapper.
    out_ref[...] = jnp.sum(loss, keepdims=True)                             # (1, 1)


def _pick_block_rows(batch_size, feat_dim, dtype):
    """Pick a batch-tile size targeting ~4 MiB embedding blocks under a
    double-buffered total of ~26 MiB (safe on v5e/v6e/v7x scoped VMEM)."""
    itemsize = jnp.dtype(dtype).itemsize

    # The VMEM block actually occupies the 128-lane-padded feature width.
    padded_d = ((feat_dim + 127) // 128) * 128

    # Per-row VMEM bytes across all live blocks:
    #   3 embedding blocks (lane-padded) + 1 weight block ((TB,1) f32 padded to 128 lanes).
    per_row_bytes = 3 * padded_d * itemsize + 128 * 4

    # Double-buffered total budget.
    budget_bytes = 26 * 1024 * 1024
    tb_budget = budget_bytes // (2 * per_row_bytes)

    # ~4 MiB per embedding block target (mem-bound roofline sweet spot).
    tb_target = (4 * 1024 * 1024) // max(1, padded_d * itemsize)

    tb = min(tb_budget, tb_target, 16384)

    # Sublane-packing alignment by dtype width.
    if itemsize >= 4:
        align = 8
    elif itemsize == 2:
        align = 16
    else:
        align = 32
    tb = max(align, (tb // align) * align)

    if tb >= batch_size:
        return batch_size                  # single block == full dim, always legal
    return tb


def weighted_triplet_margin_loss(anchor_mf, positive_mf, negative_mf, anchor_label,
                                 *, weights_1, margin=1.0, reduction_type="mean",
                                 block_rows=None):
    if reduction_type not in ("mean", "sum"):
        raise ValueError(f"unsupported reduction_type: {reduction_type!r}")

    B, D = anchor_mf.shape

    # Fold the label into an f32 weight column once in the wrapper.
    w = jnp.where(anchor_label.reshape(B, 1) == 1,
                  jnp.float32(weights_1), jnp.float32(1.0)).astype(jnp.float32)

    itemsize = jnp.dtype(anchor_mf.dtype).itemsize
    if block_rows is None:
        block_rows = _pick_block_rows(B, D, anchor_mf.dtype)
    # TODO(synk): for genuinely tiny D (e.g. 32) a lane-dense (B*D//128, 128)
    # reshape with a segmented row reduction would recover full vld/DMA
    # efficiency; not implemented here since D is module-configurable.

    num_blocks = pl.cdiv(B, block_rows)
    grid = (num_blocks,)

    kernel = functools.partial(
        _wtml_kernel,
        margin=float(margin),
        eps=1e-6,
        batch_size=B,
        block_rows=block_rows,
    )

    emb_spec = pl.BlockSpec((block_rows, D), lambda i: (i, 0))
    w_spec = pl.BlockSpec((block_rows, 1), lambda i: (i, 0))
    out_spec = pl.BlockSpec((1, 1), lambda i: (i, 0))   # one partial per block

    cost = pl.CostEstimate(
        flops=8 * B * D,
        transcendentals=2 * B,
        bytes_accessed=3 * B * D * itemsize + B * 4 + num_blocks * 4,
    )

    partials = pl.pallas_call(
        kernel,
        out_shape=jax.ShapeDtypeStruct((num_blocks, 1), jnp.float32),
        grid=grid,
        in_specs=[emb_spec, emb_spec, emb_spec, w_spec],
        out_specs=out_spec,
        compiler_params=pltpu.CompilerParams(
            # Per-block partials are independent -> "parallel" lets v7x's two
            # TensorCores each stream half the batch; neutral on v5e/v6e.
            dimension_semantics=("parallel",),
            vmem_limit_bytes=32 * 1024 * 1024,
        ),
        cost_estimate=cost,
    )(anchor_mf, positive_mf, negative_mf, w)

    total = jnp.sum(partials)
    if reduction_type == "mean":
        total = total / jnp.float32(B)
    return total


def _reference(anchor, positive, negative, label, weights_1, margin, reduction_type):
    eps = 1e-6
    d_ap = jnp.sqrt(jnp.sum((anchor - positive + eps) ** 2, axis=-1))
    d_an = jnp.sqrt(jnp.sum((anchor - negative + eps) ** 2, axis=-1))
    w = jnp.where(label == 1, weights_1, 1.0).astype(jnp.float32)
    loss = jnp.maximum(d_ap - d_an + margin, 0.0) * w
    if reduction_type == "mean":
        return loss.mean()
    return loss.sum()


if __name__ == "__main__":
    weights_1 = 2.5
    margin = 1.0
    key = jax.random.PRNGKey(0)

    # --- case 1: small shapes from the module (single block path) ---
    B, D = 8, 32
    k_a, k_p, k_n, k_l, key = jax.random.split(key, 5)
    anchor = jax.random.normal(k_a, (B, D), dtype=jnp.float32)
    positive = jax.random.normal(k_p, (B, D), dtype=jnp.float32)
    negative = jax.random.normal(k_n, (B, D), dtype=jnp.float32)
    anchor_label = jax.random.bernoulli(k_l, 0.5, (B,)).astype(jnp.int32)

    loss = weighted_triplet_margin_loss(
        anchor, positive, negative, anchor_label,
        weights_1=weights_1, margin=margin, reduction_type="mean",
    )
    loss = jax.block_until_ready(loss)
    ref = _reference(anchor, positive, negative, anchor_label,
                     weights_1, margin, "mean")
    assert jnp.allclose(loss, ref, rtol=1e-5, atol=1e-5), (loss, ref)

    # --- case 2: exercise the tiled / ragged / parallel-partials path ---
    B2, D2 = 20, 128          # 20 rows, forced 8-row blocks -> 3 tiles, last ragged
    k_a, k_p, k_n, k_l, key = jax.random.split(key, 5)
    a2 = jax.random.normal(k_a, (B2, D2), dtype=jnp.float32)
    p2 = jax.random.normal(k_p, (B2, D2), dtype=jnp.float32)
    n2 = jax.random.normal(k_n, (B2, D2), dtype=jnp.float32)
    l2 = jax.random.bernoulli(k_l, 0.5, (B2,)).astype(jnp.int32)

    for red in ("mean", "sum"):
        got = weighted_triplet_margin_loss(
            a2, p2, n2, l2,
            weights_1=weights_1, margin=margin, reduction_type=red,
            block_rows=8,
        )
        got = jax.block_until_ready(got)
        want = _reference(a2, p2, n2, l2, weights_1, margin, red)
        assert jnp.allclose(got, want, rtol=1e-5, atol=1e-5), (red, got, want)

    # --- case 3: bf16 inputs exercise the dtype-aware tile alignment path ---
    B3, D3 = 64, 256
    k_a, k_p, k_n, k_l, key = jax.random.split(key, 5)
    a3 = jax.random.normal(k_a, (B3, D3), dtype=jnp.float32).astype(jnp.bfloat16)
    p3 = jax.random.normal(k_p, (B3, D3), dtype=jnp.float32).astype(jnp.bfloat16)
    n3 = jax.random.normal(k_n, (B3, D3), dtype=jnp.float32).astype(jnp.bfloat16)
    l3 = jax.random.bernoulli(k_l, 0.5, (B3,)).astype(jnp.int32)

    got3 = weighted_triplet_margin_loss(
        a3, p3, n3, l3,
        weights_1=weights_1, margin=margin, reduction_type="mean",
        block_rows=16,
    )
    got3 = jax.block_until_ready(got3)
    want3 = _reference(a3.astype(jnp.float32), p3.astype(jnp.float32),
                       n3.astype(jnp.float32), l3, weights_1, margin, "mean")
    assert jnp.allclose(got3, want3, rtol=2e-2, atol=2e-2), (got3, want3)

    print("KERNEL_OK")
</pallas_src>

<mosaic_0001>
module attributes {stable_mosaic.version = 11 : i64} {
  func.func @_wtml_kernel(%arg0: i32, %arg1: memref<8x32xf32, #tpu.memory_space<vmem>>, %arg2: memref<8x32xf32, #tpu.memory_space<vmem>>, %arg3: memref<8x32xf32, #tpu.memory_space<vmem>>, %arg4: memref<8x1xf32, #tpu.memory_space<vmem>>, %arg5: memref<1x1xf32, #tpu.memory_space<vmem>>) attributes {dimension_semantics = [#tpu.dimension_semantics<parallel>], iteration_bounds = array<i64: 1>, scalar_prefetch = 0 : i64, scratch_operands = 0 : i64, tpu.core_type = #tpu.core_type<tc>, window_params = [{transform_indices = @transform_0, window_bounds = array<i64: 8, 32>}, {transform_indices = @transform_1, window_bounds = array<i64: 8, 32>}, {transform_indices = @transform_2, window_bounds = array<i64: 8, 32>}, {transform_indices = @transform_3, window_bounds = array<i64: 8, 1>}, {transform_indices = @transform_4, window_bounds = array<i64: 1, 1>}]} {
    %c0 = arith.constant 0 : index
    %c0_0 = arith.constant 0 : index
    %0 = vector.load %arg1[%c0, %c0_0] : memref<8x32xf32, #tpu.memory_space<vmem>>, vector<8x32xf32>
    %c0_1 = arith.constant 0 : index
    %c0_2 = arith.constant 0 : index
    %1 = vector.load %arg2[%c0_1, %c0_2] : memref<8x32xf32, #tpu.memory_space<vmem>>, vector<8x32xf32>
    %c0_3 = arith.constant 0 : index
    %c0_4 = arith.constant 0 : index
    %2 = vector.load %arg3[%c0_3, %c0_4] : memref<8x32xf32, #tpu.memory_space<vmem>>, vector<8x32xf32>
    %3 = arith.subf %0, %1 : vector<8x32xf32>
    %cst = arith.constant 9.99999997E-7 : f32
    %4 = vector.broadcast %cst : f32 to vector<8x32xf32>
    %5 = arith.addf %3, %4 : vector<8x32xf32>
    %6 = arith.mulf %5, %5 : vector<8x32xf32>
    %cst_5 = arith.constant dense<0.000000e+00> : vector<8xf32>
    %7 = vector.multi_reduction <add>, %6, %cst_5 [1] : vector<8x32xf32> to vector<8xf32>
    %8 = vector.shape_cast %7 : vector<8xf32> to vector<8x1xf32>
    %9 = math.sqrt %8 : vector<8x1xf32>
    %10 = arith.subf %0, %2 : vector<8x32xf32>
    %cst_6 = arith.constant 9.99999997E-7 : f32
    %11 = vector.broadcast %cst_6 : f32 to vector<8x32xf32>
    %12 = arith.addf %10, %11 : vector<8x32xf32>
    %13 = arith.mulf %12, %12 : vector<8x32xf32>
    %cst_7 = arith.constant dense<0.000000e+00> : vector<8xf32>
    %14 = vector.multi_reduction <add>, %13, %cst_7 [1] : vector<8x32xf32> to vector<8xf32>
    %15 = vector.shape_cast %14 : vector<8xf32> to vector<8x1xf32>
    %16 = math.sqrt %15 : vector<8x1xf32>
    %c0_8 = arith.constant 0 : index
    %c0_9 = arith.constant 0 : index
    %17 = vector.load %arg4[%c0_8, %c0_9] : memref<8x1xf32, #tpu.memory_space<vmem>>, vector<8x1xf32>
    %18 = arith.subf %9, %16 : vector<8x1xf32>
    %cst_10 = arith.constant 1.000000e+00 : f32
    %19 = vector.broadcast %cst_10 : f32 to vector<8x1xf32>
    %20 = arith.addf %18, %19 : vector<8x1xf32>
    %cst_11 = arith.constant 0.000000e+00 : f32
    %21 = vector.broadcast %cst_11 : f32 to vector<8x1xf32>
    %22 = arith.maximumf %20, %21 : vector<8x1xf32>
    %23 = arith.mulf %22, %17 : vector<8x1xf32>
    %24 = tpu.iota {dimensions = array<i32: 0>} : vector<8x1xi32>
    %c8_i32 = arith.constant 8 : i32
    %25 = arith.muli %arg0, %c8_i32 : i32
    %26 = vector.broadcast %25 : i32 to vector<8x1xi32>
    %27 = arith.addi %24, %26 : vector<8x1xi32>
    %c8_i32_12 = arith.constant 8 : i32
    %28 = vector.broadcast %c8_i32_12 : i32 to vector<8x1xi32>
    %29 = arith.cmpi slt, %27, %28 : vector<8x1xi32>
    %cst_13 = arith.constant 0.000000e+00 : f32
    %30 = vector.broadcast %cst_13 : f32 to vector<8x1xf32>
    %31 = arith.select %29, %23, %30 : vector<8x1xi1>, vector<8x1xf32>
    %32 = vector.shape_cast %31 : vector<8x1xf32> to vector<1x8x1xf32>
    %cst_14 = arith.constant dense<0.000000e+00> : vector<1xf32>
    %33 = vector.multi_reduction <add>, %32, %cst_14 [1, 2] : vector<1x8x1xf32> to vector<1xf32>
    %34 = vector.shape_cast %33 : vector<1xf32> to vector<1x1x1xf32>
    %35 = vector.extract %34[0, 0, 0] : f32 from vector<1x1x1xf32>
    %36 = vector.broadcast %35 : f32 to vector<1x1xf32>
    %c0_15 = arith.constant 0 : index
    %c0_16 = arith.constant 0 : index
    %37 = vector.load %arg5[%c0_15, %c0_16] : memref<1x1xf32, #tpu.memory_space<vmem>>, vector<1x1xf32>
    tpu.vector_store %arg5[%c0_15, %c0_16], %36 {strides = array<i32>} : memref<1x1xf32, #tpu.memory_space<vmem>>, vector<1x1xf32>,
    return
  }
  func.func @transform_0(%arg0: i32) -> (i32, i32) {
    %c0_i32 = arith.constant 0 : i32
    %c0_i32_0 = arith.constant 0 : i32
    return %arg0, %c0_i32 : i32, i32
  }
  func.func @transform_1(%arg0: i32) -> (i32, i32) {
    %c0_i32 = arith.constant 0 : i32
    %c0_i32_0 = arith.constant 0 : i32
    return %arg0, %c0_i32 : i32, i32
  }
  func.func @transform_2(%arg0: i32) -> (i32, i32) {
    %c0_i32 = arith.constant 0 : i32
    %c0_i32_0 = arith.constant 0 : i32
    return %arg0, %c0_i32 : i32, i32
  }
  func.func @transform_3(%arg0: i32) -> (i32, i32) {
    %c0_i32 = arith.constant 0 : i32
    %c0_i32_0 = arith.constant 0 : i32
    return %arg0, %c0_i32 : i32, i32
  }
  func.func @transform_4(%arg0: i32) -> (i32, i32) {
    %c0_i32 = arith.constant 0 : i32
    %c0_i32_0 = arith.constant 0 : i32
    return %arg0, %c0_i32 : i32, i32
  }
}

</mosaic_0001>

<llo_original>
// kernel: tpu_custom_call.1
$region0: #{tpu_custom_call.1}
  #allocation0 [shape = 'u32[]', space=smem, size = 0x4, offset = 0x4, fixed_abs, tag = 'smem constant byte address 0x4 - core index']
  #allocation1 [shape = 'u32[72,128]{1,0:T(1,128)}', space=vmem, size = 0x9000, scoped, tag = 'internal scratch']
  %s0 = inlined_call_operand.vmem [shape: f32[8,32], index: 0, kind: input, shape index: {}]
  %s1 = inlined_call_operand.hbm [shape: f32[8,32], index: 1, kind: input, shape index: {}]
  %s2 = inlined_call_operand.hbm [shape: f32[8,32], index: 2, kind: input, shape index: {}]
  %s3 = inlined_call_operand.vmem [shape: f32[8,1], index: 3, kind: input, shape index: {}]
  %s4 = inlined_call_operand.hbm [shape: f32[1,1], index: 4, kind: output, shape index: {}]
  %s5 = sld [smem:[#allocation0]]
  $region34: #{tpu_custom_call.1} parent=0
    _
  %s7 = ssub.s32 1, %s5
  %s8 = scalar_select 0, %s7, %s5
  $region1: #{tpu_custom_call.1} parent=0
    #allocation2 [shape = 'u8[4096]{0}', space=vmem, size = 0x1000, scoped, tag = 'input window, operand 1, single buffered']
    #allocation3 [shape = 's32[1]{0}', space=sflag, size = 0x4, scoped, tag = 'scoped memory for tpu_custom_call.1']
    #allocation4 [shape = 's32[1]{0}', space=sflag, size = 0x4, scoped, tag = 'scoped memory for tpu_custom_call.1']
    #allocation5 [shape = 'u8[4096]{0}', space=vmem, size = 0x1000, scoped, tag = 'input window, operand 2, single buffered']
    #allocation6 [shape = 's32[1]{0}', space=sflag, size = 0x4, scoped, tag = 'scoped memory for tpu_custom_call.1']
    #allocation7 [shape = 'u8[512]{0}', space=vmem, size = 0x400, scoped, tag = 'output window, operand 0, single buffered']
    %9 = vsyncpa [#allocation3], 0
    %10 = vsyncpa [#allocation6], 0
    %11 = vsyncpa [#allocation4], 0
    // Predicated region
    $region2: #{tpu_custom_call.1} parent=1 // pred_check
      _
    $region3: #{tpu_custom_call.1} parent=1 // pred_check_branch
      %13 = sbr.rel (0) target = $region5
    $region4: #{tpu_custom_call.1} parent=1 // pred_region
      _
    $region5: #{tpu_custom_call.1} parent=1 // pred_fallthru
      _
    // Predicated region
    $region6: #{tpu_custom_call.1} parent=1 // pred_check
      _
    $region7: #{tpu_custom_call.1} parent=1 // pred_check_branch
      %15 = sbr.rel (0) target = $region9
    $region8: #{tpu_custom_call.1} parent=1 // pred_region
      %17 = vsyncadd [#allocation3], 0
      %s19 = sshll.u32 %s1, 4
      %s20 = int_to_ptr.hbm [resolvable:$true] %s19
      %s21 = sshll.u32 [#allocation2], 4
      %s22 = int_to_ptr.vmem [resolvable:$true] %s21
      %24 = dma.hbm_to_vmem [thread:$0]  %s20, 128, %s22, [#allocation3]
    $region9: #{tpu_custom_call.1} parent=1 // pred_fallthru
      _
    // Predicated region
    $region10: #{tpu_custom_call.1} parent=1 // pred_check
      _
    $region11: #{tpu_custom_call.1} parent=1 // pred_check_branch
      %26 = sbr.rel (0) target = $region13
    $region12: #{tpu_custom_call.1} parent=1 // pred_region
      %28 = vsyncadd [#allocation6], 0
      %s30 = sshll.u32 %s2, 4
      %s31 = int_to_ptr.hbm [resolvable:$true] %s30
      %s32 = sshll.u32 [#allocation5], 4
      %s33 = int_to_ptr.vmem [resolvable:$true] %s32
      %35 = dma.hbm_to_vmem [thread:$0]  %s31, 128, %s33, [#allocation6]
    $region13: #{tpu_custom_call.1} parent=1 // pred_fallthru
      _
    // Predicated region
    $region14: #{tpu_custom_call.1} parent=1 // pred_check
      _
    $region15: #{tpu_custom_call.1} parent=1 // pred_check_branch
      %37 = sbr.rel (0) target = $region17
    $region16: #{tpu_custom_call.1} parent=1 // pred_region
      _
    $region17: #{tpu_custom_call.1} parent=1 // pred_fallthru
      _
    // Predicated region
    $region18: #{tpu_custom_call.1} parent=1 // pred_check
      _
    $region19: #{tpu_custom_call.1} parent=1 // pred_check_branch
      %39 = sbr.rel (0) target = $region21
    $region20: #{tpu_custom_call.1} parent=1 // pred_region
      %41 = dma.done [#allocation3], 128
    $region21: #{tpu_custom_call.1} parent=1 // pred_fallthru
      _
    // Predicated region
    $region22: #{tpu_custom_call.1} parent=1 // pred_check
      _
    $region23: #{tpu_custom_call.1} parent=1 // pred_check_branch
      %43 = sbr.rel (0) target = $region25
    $region24: #{tpu_custom_call.1} parent=1 // pred_region
      %45 = dma.done [#allocation6], 128
    $region25: #{tpu_custom_call.1} parent=1 // pred_fallthru
      _
    %v46 = vld [vmem:[%s0] sm:$0xff]
    %v47 = vld [vmem:[#allocation2] sm:$0xff]
    %v48 = vld [vmem:[#allocation5] sm:$0xff]
    %v49 = vsub.f32 %v46, %v47
    %v50 = vadd.f32 %v49, 1e-06
    %v51 = vmul.f32 %v50, %v50
    %vm52 = vcmask 261120
    %v53 = vsel %vm52, %v51, 0.0
    %54 = vadd.xlane.f32.xlu0 %v53
    %v55 = vpop.xlane.xlu0 %54
    %v56 = vrsqrt.pop %v55
    %v57 = vmul.f32 %v56, %v55
    %v58 = vmul.f32 %v57, %v56
    %v59 = vmul.f32 0.5, %v58
    %v60 = vsub.f32 1.5, %v59
    %v61 = vmul.f32 %v56, %v60
    %v62 = vmul.f32 %v55, %v61
    %vm63 = vcmp.eq.f32.partialorder %v55, inf
    %v64 = vsel %vm63, %v55, %v62
    %vm65 = vcmp.eq.f32.partialorder %v55, 0.0
    %v66 = vand.u32 %v55, 2147483648
    %v67 = vsel %vm65, %v66, %v64
    %v68 = vsub.f32 %v46, %v48
    %v69 = vadd.f32 %v68, 1e-06
    %v70 = vmul.f32 %v69, %v69
    %v71 = vsel %vm52, %v70, 0.0
    %72 = vadd.xlane.f32.xlu0 %v71
    %v73 = vpop.xlane.xlu0 %72
    %v74 = vrsqrt.pop %v73
    %v75 = vmul.f32 %v74, %v73
    %v76 = vmul.f32 %v75, %v74
    %v77 = vmul.f32 0.5, %v76
    %v78 = vsub.f32 1.5, %v77
    %v79 = vmul.f32 %v74, %v78
    %v80 = vmul.f32 %v73, %v79
    %vm81 = vcmp.eq.f32.partialorder %v73, inf
    %v82 = vsel %vm81, %v73, %v80
    %vm83 = vcmp.eq.f32.partialorder %v73, 0.0
    %v84 = vand.u32 %v73, 2147483648
    %v85 = vsel %vm83, %v84, %v82
    %v86 = vld [vmem:[%s3] sm:$0xff]
    %v87 = vsub.f32 %v67, %v85
    %v88 = vadd.f32 %v87, 1.0
    %v89 = vmax.f32 %v88, 0.0
    %v90 = vmul.f32 %v89, %v86
    %v91 = vlaneseq
    %v92 = vshrl.u32 %v91, 7
    %s93 = smul.u32 0, 8
    %v94 = vstv %s93
    %v95 = vadd.s32 %v92, %v94
    %vm96 = vcmp.lt.s32.totalorder %v95, 8
    %v97 = vsel %vm96, %v90, 0.0
    %vm98 = vcmask 7168
    %v99 = vsel %vm98, %v97, 0.0
    %100 = vadd.xlane.f32.xlu0 %v99
    %v101 = vpop.xlane.xlu0 %100
    %v102 = vrot.slane %v101, 4
    %v103 = vadd.f32 %v101, %v102
    %v104 = vrot.slane %v103, 2
    %v105 = vadd.f32 %v103, %v104
    %v106 = vrot.slane %v105, 1
    %v107 = vadd.f32 %v105, %v106
    %s108 = vtos %v107
    %v109 = vstv %s108
    %vm110 = vcmask 0
    %111 = vst.msk [vmem:[#allocation7] sm:$0x1] %vm110, %v109
    // Predicated region
    $region26: #{tpu_custom_call.1} parent=1 // pred_check
      _
    $region27: #{tpu_custom_call.1} parent=1 // pred_check_branch
      %113 = sbr.rel (0) target = $region29
    $region28: #{tpu_custom_call.1} parent=1 // pred_region
      %115 = vsyncadd [#allocation4], 0
      %s117 = sshll.u32 [#allocation7], 4
      %s118 = int_to_ptr.vmem [resolvable:$true] %s117
      %s119 = sshll.u32 %s4, 4
      %s120 = int_to_ptr.hbm [resolvable:$true] %s119
      %122 = dma.vmem_to_hbm [thread:$0]  %s118, 16, %s120, [#allocation4]
    $region29: #{tpu_custom_call.1} parent=1 // pred_fallthru
      _
    // Predicated region
    $region30: #{tpu_custom_call.1} parent=1 // pred_check
      _
    $region31: #{tpu_custom_call.1} parent=1 // pred_check_branch
      %124 = sbr.rel (0) target = $region33
    $region32: #{tpu_custom_call.1} parent=1 // pred_region
      %126 = dma.done [#allocation4], 16
    $region33: #{tpu_custom_call.1} parent=1 // pred_fallthru
      _
    %127 = vsyncpa [#allocation3], 1
    %128 = vsyncpa [#allocation6], 1
    %129 = vsyncpa [#allocation4], 1

</llo_original>
